<compile_context>
chip_gen: v7x
topology: tpu7x:2x2x1
jax: 0.10.0
libtpu: 0.0.40
codegen_flags: <defaults>
</compile_context>

<pallas_src>
import functools

import jax
import jax.numpy as jnp
from jax.experimental import pallas as pl
from jax.experimental.pallas import tpu as pltpu

_LANE = 128


def _round_up(x, m):
    return (x + m - 1) // m * m


def _actor_kernel(s_ref, wih_ref, bg_ref, w1_ref, b1_ref, w2_ref, b2_ref,
                  wa_ref, ba_ref, out_ref, *, hidden, gate_pad, packed,
                  actions_n):
    # ---- LSTM single step (h0 = c0 = 0, forget gate dead) ---------------
    s = s_ref[...].astype(jnp.bfloat16)
    gates = jnp.dot(s, wih_ref[...],
                    preferred_element_type=jnp.float32) + bg_ref[...]

    if packed:
        # i/g/o packed at true width `hidden` inside one 128-lane slab:
        #   lanes [0,h) = i, [h,2h) = g, [2h,3h) = o, rest zero (-> gates=0).
        lanes = gates.shape[-1]                       # == 128
        sg = jax.nn.sigmoid(gates)                    # one EUP pass
        th = jnp.tanh(gates)                          # one EUP pass
        # Align g and o onto lanes [0,h) with XLU rolls (free slot).
        g_al = pltpu.roll(th, shift=lanes - hidden, axis=1)       # lane j <- j+h
        o_al = pltpu.roll(sg, shift=lanes - 2 * hidden, axis=1)   # lane j <- j+2h
        c = sg * g_al                                 # lanes [0,h): i * g
        h_val = o_al * jnp.tanh(c)                    # lanes [0,h): o * tanh(c)
        # Lanes >= h carry finite garbage; w1_t rows [h:128) are zero, so
        # they contribute exactly 0 to fc1.
    else:
        # Per-gate 128-padded layout: gate k occupies lanes [k*gate_pad, ...).
        hp = gate_pad
        i_g = jax.nn.sigmoid(gates[:, 0 * hp:1 * hp])
        g_g = jnp.tanh(gates[:, 1 * hp:2 * hp])
        o_g = jax.nn.sigmoid(gates[:, 2 * hp:3 * hp])
        h_val = o_g * jnp.tanh(i_g * g_g)             # pad lanes -> exact 0

    # ---- fc1 -> relu -----------------------------------------------------
    x = jnp.dot(h_val.astype(jnp.bfloat16), w1_ref[...],
                preferred_element_type=jnp.float32) + b1_ref[...]
    x = jnp.maximum(x, 0.0)

    # ---- fc2 -> relu -----------------------------------------------------
    x = jnp.dot(x.astype(jnp.bfloat16), w2_ref[...],
                preferred_element_type=jnp.float32) + b2_ref[...]
    x = jnp.maximum(x, 0.0)

    # ---- alpha layer -> softplus + 0.001 (store only live lanes) ---------
    z = jnp.dot(x.astype(jnp.bfloat16), wa_ref[...],
                preferred_element_type=jnp.float32) + ba_ref[...]
    out_ref[...] = (jax.nn.softplus(z[:, :actions_n]) + 0.001
                    ).astype(out_ref.dtype)


def actor_forward(state, params, actions_n, lstm_hidden, *, block_b=1024):
    """Full ActorNetwork forward in one Pallas call.

    state:       (B, state_n) float32
    params:      dict from init_params() (lane-padded, bf16 weights, f32 biases)
    actions_n:   true (unpadded) number of actions
    lstm_hidden: true (unpadded) LSTM hidden size
    returns alpha: (B, actions_n) float32 (Dirichlet concentration)
    """
    B, state_n = state.shape
    Hp = params["w1_t"].shape[0]                  # round_up(H, 128)
    gate_w = params["w_ih_t"].shape[1]            # 128 (packed) or 3*Hp
    packed = (gate_w == Hp)
    f1p = params["w1_t"].shape[1]
    f2p = params["w2_t"].shape[1]
    a_pad = params["wa_t"].shape[1]

    # Batch tiling: biggest tile up to block_b (amortize ~0.35us/grid-step on
    # single-TC v5e/v6e), but keep >=4 grid steps when batch allows so both
    # v7x TensorCores get work and each stays double-buffered.
    block_b = max(8, (block_b // 8) * 8)
    B8 = _round_up(B, 8)
    TB = min(block_b, max(8, _round_up(pl.cdiv(B8, 4), 8)))
    Bp = _round_up(B, TB)
    if Bp != B:
        state = jnp.pad(state, ((0, Bp - B), (0, 0)))
    grid = (Bp // TB,)

    def resident(arr):  # weight/bias: same block for every grid step
        return pl.BlockSpec(arr.shape, lambda i: (0, 0))

    operands = (state,
                params["w_ih_t"], params["b_gates"],
                params["w1_t"], params["b1"],
                params["w2_t"], params["b2"],
                params["wa_t"], params["ba"])

    flops = 2 * Bp * (state_n * gate_w + Hp * f1p + f1p * f2p + f2p * a_pad)
    transcendentals = Bp * (4 * Hp + 2 * a_pad)
    bytes_accessed = (sum(int(o.size) * o.dtype.itemsize for o in operands)
                      + Bp * actions_n * 4)

    kernel = functools.partial(_actor_kernel, hidden=lstm_hidden, gate_pad=Hp,
                               packed=packed, actions_n=actions_n)

    out = pl.pallas_call(
        kernel,
        out_shape=jax.ShapeDtypeStruct((Bp, actions_n), jnp.float32),
        grid=grid,
        in_specs=[
            pl.BlockSpec((TB, state_n), lambda i: (i, 0)),
            resident(params["w_ih_t"]), resident(params["b_gates"]),
            resident(params["w1_t"]), resident(params["b1"]),
            resident(params["w2_t"]), resident(params["b2"]),
            resident(params["wa_t"]), resident(params["ba"]),
        ],
        out_specs=pl.BlockSpec((TB, actions_n), lambda i: (i, 0)),
        compiler_params=pltpu.CompilerParams(
            dimension_semantics=("parallel",),
            vmem_limit_bytes=32 * 1024 * 1024),
        cost_estimate=pl.CostEstimate(
            flops=flops,
            transcendentals=transcendentals,
            bytes_accessed=bytes_accessed),
    )(*operands)

    return out[:B]


def init_params(key, state_n, lstm_hidden, fc1_n, fc2_n, actions_n):
    """Parameter init mirroring the PyTorch module, lane-padded for TPU.

    LSTM weights: uniform(-1/sqrt(H), 1/sqrt(H)) (PyTorch default).
    fc1/fc2: orthogonal(std=sqrt(2)), alphaLayer: orthogonal(std=0.05),
    biases = 0 (layerInit).

    Only the i/g/o gate columns are stored (the forget gate multiplies
    c0 == 0 and is dead for this stateless single-step use).  If 3*H <= 128
    the gates are packed at true width into one 128-lane slab, otherwise each
    gate is padded to 128 lanes.  All other feature dims are zero-padded to
    multiples of 128 so matmuls are lane-dense; pad lanes carry zero weights
    and zero biases so they stay inert.  Weights are stored in bf16
    (f32-accumulated in-kernel), biases in f32.
    """
    ks = jax.random.split(key, 6)
    h = lstm_hidden
    hp = _round_up(h, _LANE)
    f1p = _round_up(fc1_n, _LANE)
    f2p = _round_up(fc2_n, _LANE)
    ap = _round_up(actions_n, _LANE)
    packed = (3 * h <= _LANE)

    bound = 1.0 / jnp.sqrt(h)
    orth = jax.nn.initializers.orthogonal

    w_ih = jax.random.uniform(ks[0], (4 * h, state_n), jnp.float32, -bound, bound)
    b_ih = jax.random.uniform(ks[1], (4 * h,), jnp.float32, -bound, bound)
    b_hh = jax.random.uniform(ks[2], (4 * h,), jnp.float32, -bound, bound)
    # W_hh exists in the module but multiplies h0 == 0; omitted from compute.

    w1 = orth(jnp.sqrt(2.0))(ks[3], (fc1_n, h), jnp.float32)
    w2 = orth(jnp.sqrt(2.0))(ks[4], (fc2_n, fc1_n), jnp.float32)
    wa = orth(0.05)(ks[5], (actions_n, fc2_n), jnp.float32)

    bsum = b_ih + b_hh
    live = (0, 2, 3)                       # PyTorch gate order i, f, g, o
    if packed:
        gate_w, stride = _LANE, h          # i/g/o packed at true width
    else:
        gate_w, stride = 3 * hp, hp        # i/g/o each padded to 128 lanes

    w_ih_t = jnp.zeros((state_n, gate_w), jnp.float32)
    b_gates = jnp.zeros((1, gate_w), jnp.float32)
    for dst, g in enumerate(live):
        w_ih_t = w_ih_t.at[:, dst * stride:dst * stride + h].set(
            w_ih[g * h:(g + 1) * h, :].T)
        b_gates = b_gates.at[0, dst * stride:dst * stride + h].set(
            bsum[g * h:(g + 1) * h])

    w1_t = jnp.zeros((hp, f1p), jnp.float32).at[:h, :fc1_n].set(w1.T)
    w2_t = jnp.zeros((f1p, f2p), jnp.float32).at[:fc1_n, :fc2_n].set(w2.T)
    wa_t = jnp.zeros((f2p, ap), jnp.float32).at[:fc2_n, :actions_n].set(wa.T)

    return {
        "w_ih_t": w_ih_t.astype(jnp.bfloat16),   # (state_n, 128) or (state_n, 3*Hp)
        "b_gates": b_gates,                      # (1, gate_w) f32
        "w1_t": w1_t.astype(jnp.bfloat16),       # (Hp, F1p)
        "b1": jnp.zeros((1, f1p), jnp.float32),
        "w2_t": w2_t.astype(jnp.bfloat16),       # (F1p, F2p)
        "b2": jnp.zeros((1, f2p), jnp.float32),
        "wa_t": wa_t.astype(jnp.bfloat16),       # (F2p, Ap)
        "ba": jnp.zeros((1, ap), jnp.float32),
    }


def _reference_forward(state, params, actions_n, lstm_hidden):
    """Pure-JAX reference with identical precision (bf16 operands, f32 acc)."""
    h = lstm_hidden
    Hp = params["w1_t"].shape[0]
    packed = params["w_ih_t"].shape[1] == Hp
    s = h if packed else Hp
    bf, f32 = jnp.bfloat16, jnp.float32

    gates = jnp.dot(state.astype(bf), params["w_ih_t"],
                    preferred_element_type=f32) + params["b_gates"]
    i_g = jax.nn.sigmoid(gates[:, 0:h])
    g_g = jnp.tanh(gates[:, s:s + h])
    o_g = jax.nn.sigmoid(gates[:, 2 * s:2 * s + h])
    hv = o_g * jnp.tanh(i_g * g_g)
    hv = jnp.pad(hv, ((0, 0), (0, Hp - h)))
    x = jnp.maximum(jnp.dot(hv.astype(bf), params["w1_t"],
                            preferred_element_type=f32) + params["b1"], 0.0)
    x = jnp.maximum(jnp.dot(x.astype(bf), params["w2_t"],
                            preferred_element_type=f32) + params["b2"], 0.0)
    z = jnp.dot(x.astype(bf), params["wa_t"],
                preferred_element_type=f32) + params["ba"]
    return (jax.nn.softplus(z) + 0.001)[:, :actions_n]


if __name__ == "__main__":
    # Small shapes consistent with the module's constructor arguments.
    B, STATE_N, LSTM_H, FC1, FC2, ACTIONS = 8, 16, 32, 64, 64, 8

    key = jax.random.PRNGKey(0)
    pkey, skey = jax.random.split(key)
    params = init_params(pkey, STATE_N, LSTM_H, FC1, FC2, ACTIONS)
    state = jax.random.normal(skey, (B, STATE_N), jnp.float32)

    alpha = jax.block_until_ready(actor_forward(state, params, ACTIONS, LSTM_H))
    ref = _reference_forward(state, params, ACTIONS, LSTM_H)
    assert alpha.shape == (B, ACTIONS)
    assert bool(jnp.all(alpha > 0.0))                  # valid Dirichlet conc.
    assert bool(jnp.allclose(alpha, ref, atol=2e-3, rtol=2e-3))

    # Exercise a multi-step batch grid (batch not a tile multiple).
    B2 = 300
    state2 = jax.random.normal(jax.random.PRNGKey(1), (B2, STATE_N), jnp.float32)
    alpha2 = jax.block_until_ready(
        actor_forward(state2, params, ACTIONS, LSTM_H, block_b=128))
    ref2 = _reference_forward(state2, params, ACTIONS, LSTM_H)
    assert alpha2.shape == (B2, ACTIONS)
    assert bool(jnp.all(alpha2 > 0.0))
    assert bool(jnp.allclose(alpha2, ref2, atol=2e-3, rtol=2e-3))

    # Exercise the non-packed (per-gate padded) path once: 3*H > 128.
    LSTM_H3 = 64
    params3 = init_params(jax.random.PRNGKey(2), STATE_N, LSTM_H3, FC1, FC2, ACTIONS)
    state3 = jax.random.normal(jax.random.PRNGKey(3), (B, STATE_N), jnp.float32)
    alpha3 = jax.block_until_ready(
        actor_forward(state3, params3, ACTIONS, LSTM_H3))
    ref3 = _reference_forward(state3, params3, ACTIONS, LSTM_H3)
    assert alpha3.shape == (B, ACTIONS)
    assert bool(jnp.all(alpha3 > 0.0))
    assert bool(jnp.allclose(alpha3, ref3, atol=2e-3, rtol=2e-3))

    print("KERNEL_OK")
</pallas_src>

<mosaic_0001>
module attributes {stable_mosaic.version = 11 : i64} {
  func.func @_actor_kernel(%arg0: i32, %arg1: memref<8x16xf32, #tpu.memory_space<vmem>>, %arg2: memref<16x128xbf16, #tpu.memory_space<vmem>>, %arg3: memref<1x128xf32, #tpu.memory_space<vmem>>, %arg4: memref<128x128xbf16, #tpu.memory_space<vmem>>, %arg5: memref<1x128xf32, #tpu.memory_space<vmem>>, %arg6: memref<128x128xbf16, #tpu.memory_space<vmem>>, %arg7: memref<1x128xf32, #tpu.memory_space<vmem>>, %arg8: memref<128x128xbf16, #tpu.memory_space<vmem>>, %arg9: memref<1x128xf32, #tpu.memory_space<vmem>>, %arg10: memref<8x8xf32, #tpu.memory_space<vmem>>) attributes {dimension_semantics = [#tpu.dimension_semantics<parallel>], iteration_bounds = array<i64: 1>, scalar_prefetch = 0 : i64, scratch_operands = 0 : i64, tpu.core_type = #tpu.core_type<tc>, window_params = [{transform_indices = @transform_0, window_bounds = array<i64: 8, 16>}, {pipeline_mode = #tpu.pipeline_mode<synchronous>, transform_indices = @transform_1, window_bounds = array<i64: 16, 128>}, {pipeline_mode = #tpu.pipeline_mode<synchronous>, transform_indices = @transform_2, window_bounds = array<i64: 1, 128>}, {pipeline_mode = #tpu.pipeline_mode<synchronous>, transform_indices = @transform_3, window_bounds = array<i64: 128, 128>}, {pipeline_mode = #tpu.pipeline_mode<synchronous>, transform_indices = @transform_4, window_bounds = array<i64: 1, 128>}, {pipeline_mode = #tpu.pipeline_mode<synchronous>, transform_indices = @transform_5, window_bounds = array<i64: 128, 128>}, {pipeline_mode = #tpu.pipeline_mode<synchronous>, transform_indices = @transform_6, window_bounds = array<i64: 1, 128>}, {pipeline_mode = #tpu.pipeline_mode<synchronous>, transform_indices = @transform_7, window_bounds = array<i64: 128, 128>}, {pipeline_mode = #tpu.pipeline_mode<synchronous>, transform_indices = @transform_8, window_bounds = array<i64: 1, 128>}, {transform_indices = @transform_9, window_bounds = array<i64: 8, 8>}]} {
    %c0 = arith.constant 0 : index
    %c0_0 = arith.constant 0 : index
    %0 = vector.load %arg1[%c0, %c0_0] : memref<8x16xf32, #tpu.memory_space<vmem>>, vector<8x16xf32>
    %1 = arith.truncf %0 : vector<8x16xf32> to vector<8x16xbf16>
    %c0_1 = arith.constant 0 : index
    %c0_2 = arith.constant 0 : index
    %2 = vector.load %arg2[%c0_1, %c0_2] : memref<16x128xbf16, #tpu.memory_space<vmem>>, vector<16x128xbf16>
    %cst = arith.constant dense<0.000000e+00> : vector<8x128xf32>
    %3 = tpu.matmul %1, %2, %cst {dimension_numbers = #tpu.dot_dimension_numbers<[1], [0], [0], [1], [0, 0, 1, 1], [], []>} : vector<8x16xbf16>, vector<16x128xbf16>, vector<8x128xf32> -> vector<8x128xf32>
    %c0_3 = arith.constant 0 : index
    %c0_4 = arith.constant 0 : index
    %4 = vector.load %arg3[%c0_3, %c0_4] : memref<1x128xf32, #tpu.memory_space<vmem>>, vector<1x128xf32>
    %5 = vector.broadcast %4 : vector<1x128xf32> to vector<8x128xf32>
    %6 = arith.addf %3, %5 : vector<8x128xf32>
    %7 = arith.negf %6 : vector<8x128xf32>
    %8 = math.exp %7 : vector<8x128xf32>
    %cst_5 = arith.constant 1.000000e+00 : f32
    %9 = vector.broadcast %cst_5 : f32 to vector<8x128xf32>
    %10 = arith.addf %9, %8 : vector<8x128xf32>
    %11 = arith.divf %9, %10 : vector<8x128xf32>
    %12 = math.tanh %6 : vector<8x128xf32>
    %c96_i32 = arith.constant 96 : i32
    %13 = tpu.dynamic_rotate %12 by %c96_i32 dim 1 : vector<8x128xf32>, i32 -> vector<8x128xf32>
    %c64_i32 = arith.constant 64 : i32
    %14 = tpu.dynamic_rotate %11 by %c64_i32 dim 1 : vector<8x128xf32>, i32 -> vector<8x128xf32>
    %15 = arith.mulf %11, %13 : vector<8x128xf32>
    %16 = math.tanh %15 : vector<8x128xf32>
    %17 = arith.mulf %14, %16 : vector<8x128xf32>
    %18 = arith.truncf %17 : vector<8x128xf32> to vector<8x128xbf16>
    %c0_6 = arith.constant 0 : index
    %c0_7 = arith.constant 0 : index
    %19 = vector.load %arg4[%c0_6, %c0_7] : memref<128x128xbf16, #tpu.memory_space<vmem>>, vector<128x128xbf16>
    %cst_8 = arith.constant dense<0.000000e+00> : vector<8x128xf32>
    %20 = tpu.matmul %18, %19, %cst_8 {dimension_numbers = #tpu.dot_dimension_numbers<[1], [0], [0], [1], [0, 0, 1, 1], [], []>} : vector<8x128xbf16>, vector<128x128xbf16>, vector<8x128xf32> -> vector<8x128xf32>
    %c0_9 = arith.constant 0 : index
    %c0_10 = arith.constant 0 : index
    %21 = vector.load %arg5[%c0_9, %c0_10] : memref<1x128xf32, #tpu.memory_space<vmem>>, vector<1x128xf32>
    %22 = vector.broadcast %21 : vector<1x128xf32> to vector<8x128xf32>
    %23 = arith.addf %20, %22 : vector<8x128xf32>
    %cst_11 = arith.constant 0.000000e+00 : f32
    %24 = vector.broadcast %cst_11 : f32 to vector<8x128xf32>
    %25 = arith.maximumf %23, %24 : vector<8x128xf32>
    %26 = arith.truncf %25 : vector<8x128xf32> to vector<8x128xbf16>
    %c0_12 = arith.constant 0 : index
    %c0_13 = arith.constant 0 : index
    %27 = vector.load %arg6[%c0_12, %c0_13] : memref<128x128xbf16, #tpu.memory_space<vmem>>, vector<128x128xbf16>
    %cst_14 = arith.constant dense<0.000000e+00> : vector<8x128xf32>
    %28 = tpu.matmul %26, %27, %cst_14 {dimension_numbers = #tpu.dot_dimension_numbers<[1], [0], [0], [1], [0, 0, 1, 1], [], []>} : vector<8x128xbf16>, vector<128x128xbf16>, vector<8x128xf32> -> vector<8x128xf32>
    %c0_15 = arith.constant 0 : index
    %c0_16 = arith.constant 0 : index
    %29 = vector.load %arg7[%c0_15, %c0_16] : memref<1x128xf32, #tpu.memory_space<vmem>>, vector<1x128xf32>
    %30 = vector.broadcast %29 : vector<1x128xf32> to vector<8x128xf32>
    %31 = arith.addf %28, %30 : vector<8x128xf32>
    %cst_17 = arith.constant 0.000000e+00 : f32
    %32 = vector.broadcast %cst_17 : f32 to vector<8x128xf32>
    %33 = arith.maximumf %31, %32 : vector<8x128xf32>
    %34 = arith.truncf %33 : vector<8x128xf32> to vector<8x128xbf16>
    %c0_18 = arith.constant 0 : index
    %c0_19 = arith.constant 0 : index
    %35 = vector.load %arg8[%c0_18, %c0_19] : memref<128x128xbf16, #tpu.memory_space<vmem>>, vector<128x128xbf16>
    %cst_20 = arith.constant dense<0.000000e+00> : vector<8x128xf32>
    %36 = tpu.matmul %34, %35, %cst_20 {dimension_numbers = #tpu.dot_dimension_numbers<[1], [0], [0], [1], [0, 0, 1, 1], [], []>} : vector<8x128xbf16>, vector<128x128xbf16>, vector<8x128xf32> -> vector<8x128xf32>
    %c0_21 = arith.constant 0 : index
    %c0_22 = arith.constant 0 : index
    %37 = vector.load %arg9[%c0_21, %c0_22] : memref<1x128xf32, #tpu.memory_space<vmem>>, vector<1x128xf32>
    %38 = vector.broadcast %37 : vector<1x128xf32> to vector<8x128xf32>
    %39 = arith.addf %36, %38 : vector<8x128xf32>
    %40 = vector.extract_strided_slice %39 {offsets = [0, 0], sizes = [8, 8], strides = [1, 1]} : vector<8x128xf32> to vector<8x8xf32>
    %cst_23 = arith.constant 0.000000e+00 : f32
    %41 = vector.broadcast %cst_23 : f32 to vector<8x8xf32>
    %42 = arith.maximumf %40, %41 : vector<8x8xf32>
    %43 = vector.broadcast %cst_23 : f32 to vector<8x8xf32>
    %44 = arith.subf %40, %43 : vector<8x8xf32>
    %45 = arith.cmpf one, %44, %44 : vector<8x8xf32>
    %46 = vector.broadcast %cst_23 : f32 to vector<8x8xf32>
    %47 = arith.addf %40, %46 : vector<8x8xf32>
    %48 = math.absf %44 : vector<8x8xf32>
    %cst_24 = arith.constant 0.000000e+00 : f32
    %49 = vector.broadcast %cst_24 : f32 to vector<8x8xf32>
    %50 = arith.subf %49, %48 : vector<8x8xf32>
    %51 = math.exp %50 : vector<8x8xf32>
    %52 = math.log1p %51 : vector<8x8xf32>
    %53 = arith.addf %42, %52 : vector<8x8xf32>
    %54 = arith.select %45, %47, %53 : vector<8x8xi1>, vector<8x8xf32>
    %cst_25 = arith.constant 1.000000e-03 : f32
    %55 = vector.broadcast %cst_25 : f32 to vector<8x8xf32>
    %56 = arith.addf %54, %55 : vector<8x8xf32>
    %c0_26 = arith.constant 0 : index
    %c0_27 = arith.constant 0 : index
    %57 = vector.load %arg10[%c0_26, %c0_27] : memref<8x8xf32, #tpu.memory_space<vmem>>, vector<8x8xf32>
    tpu.vector_store %arg10[%c0_26, %c0_27], %56 {strides = array<i32>} : memref<8x8xf32, #tpu.memory_space<vmem>>, vector<8x8xf32>,
    return
  }
  func.func @transform_0(%arg0: i32) -> (i32, i32) {
    %c0_i32 = arith.constant 0 : i32
    %c0_i32_0 = arith.constant 0 : i32
    return %arg0, %c0_i32 : i32, i32
  }
  func.func @transform_1(%arg0: i32) -> (i32, i32) {
    %c0_i32 = arith.constant 0 : i32
    %c0_i32_0 = arith.constant 0 : i32
    %c0_i32_1 = arith.constant 0 : i32
    return %c0_i32, %c0_i32_0 : i32, i32
  }
  func.func @transform_2(%arg0: i32) -> (i32, i32) {
    %c0_i32 = arith.constant 0 : i32
    %c0_i32_0 = arith.constant 0 : i32
    %c0_i32_1 = arith.constant 0 : i32
    return %c0_i32, %c0_i32_0 : i32, i32
  }
  func.func @transform_3(%arg0: i32) -> (i32, i32) {
    %c0_i32 = arith.constant 0 : i32
    %c0_i32_0 = arith.constant 0 : i32
    %c0_i32_1 = arith.constant 0 : i32
    return %c0_i32, %c0_i32_0 : i32, i32
  }
  func.func @transform_4(%arg0: i32) -> (i32, i32) {
    %c0_i32 = arith.constant 0 : i32
    %c0_i32_0 = arith.constant 0 : i32
    %c0_i32_1 = arith.constant 0 : i32
    return %c0_i32, %c0_i32_0 : i32, i32
  }
  func.func @transform_5(%arg0: i32) -> (i32, i32) {
    %c0_i32 = arith.constant 0 : i32
    %c0_i32_0 = arith.constant 0 : i32
    %c0_i32_1 = arith.constant 0 : i32
    return %c0_i32, %c0_i32_0 : i32, i32
  }
  func.func @transform_6(%arg0: i32) -> (i32, i32) {
    %c0_i32 = arith.constant 0 : i32
    %c0_i32_0 = arith.constant 0 : i32
    %c0_i32_1 = arith.constant 0 : i32
    return %c0_i32, %c0_i32_0 : i32, i32
  }
  func.func @transform_7(%arg0: i32) -> (i32, i32) {
    %c0_i32 = arith.constant 0 : i32
    %c0_i32_0 = arith.constant 0 : i32
    %c0_i32_1 = arith.constant 0 : i32
    return %c0_i32, %c0_i32_0 : i32, i32
  }
  func.func @transform_8(%arg0: i32) -> (i32, i32) {
    %c0_i32 = arith.constant 0 : i32
    %c0_i32_0 = arith.constant 0 : i32
    %c0_i32_1 = arith.constant 0 : i32
    return %c0_i32, %c0_i32_0 : i32, i32
  }
  func.func @transform_9(%arg0: i32) -> (i32, i32) {
    %c0_i32 = arith.constant 0 : i32
    %c0_i32_0 = arith.constant 0 : i32
    return %arg0, %c0_i32 : i32, i32
  }
}

</mosaic_0001>

<llo_original>
// kernel: tpu_custom_call.1
$region0: #{tpu_custom_call.1}
  #allocation0 [shape = 'u32[]', space=smem, size = 0x4, offset = 0x4, fixed_abs, tag = 'smem constant byte address 0x4 - core index']
  #allocation1 [shape = 'u32[144,128]{1,0:T(1,128)}', space=vmem, size = 0x12000, scoped, tag = 'internal scratch']
  %s0 = inlined_call_operand.hbm [shape: f32[8,16], index: 0, kind: input, shape index: {}]
  %s1 = inlined_call_operand.hbm [shape: bf16[16,128], index: 1, kind: input, shape index: {}]
  %s2 = inlined_call_operand.vmem [shape: f32[1,128], index: 2, kind: input, shape index: {}]
  %s3 = inlined_call_operand.hbm [shape: bf16[128,128], index: 3, kind: input, shape index: {}]
  %s4 = inlined_call_operand.vmem [shape: f32[1,128], index: 4, kind: input, shape index: {}]
  %s5 = inlined_call_operand.hbm [shape: bf16[128,128], index: 5, kind: input, shape index: {}]
  %s6 = inlined_call_operand.vmem [shape: f32[1,128], index: 6, kind: input, shape index: {}]
  %s7 = inlined_call_operand.hbm [shape: bf16[128,128], index: 7, kind: input, shape index: {}]
  %s8 = inlined_call_operand.vmem [shape: f32[1,128], index: 8, kind: input, shape index: {}]
  %s9 = inlined_call_operand.hbm [shape: f32[8,8], index: 9, kind: output, shape index: {}]
  %s10 = sld [smem:[#allocation0]]
  $region66: #{tpu_custom_call.1} parent=0
    _
  %s12 = ssub.s32 1, %s10
  %s13 = scalar_select 0, %s12, %s10
  $region1: #{tpu_custom_call.1} parent=0
    #allocation2 [shape = 'u8[4096]{0}', space=vmem, size = 0x1000, scoped, tag = 'input window, operand 0, single buffered']
    #allocation3 [shape = 's32[1]{0}', space=sflag, size = 0x4, scoped, tag = 'scoped memory for tpu_custom_call.1']
    #allocation4 [shape = 's32[1]{0}', space=sflag, size = 0x4, scoped, tag = 'scoped memory for tpu_custom_call.1']
    #allocation5 [shape = 'u8[4096]{0}', space=vmem, size = 0x1000, scoped, tag = 'input window, operand 1, single buffered']
    #allocation6 [shape = 's32[1]{0}', space=sflag, size = 0x4, scoped, tag = 'scoped memory for tpu_custom_call.1']
    #allocation7 [shape = 'u8[32768]{0}', space=vmem, size = 0x8000, scoped, tag = 'input window, operand 3, single buffered']
    #allocation8 [shape = 'u8[32768]{0}', space=vmem, size = 0x8000, scoped, tag = 'input window, operand 5, single buffered']
    #allocation9 [shape = 's32[1]{0}', space=sflag, size = 0x4, scoped, tag = 'scoped memory for tpu_custom_call.1']
    #allocation10 [shape = 'u8[32768]{0}', space=vmem, size = 0x8000, scoped, tag = 'input window, operand 7, single buffered']
    #allocation11 [shape = 'u8[4096]{0}', space=vmem, size = 0x1000, scoped, tag = 'output window, operand 0, single buffered']
    %14 = vsyncpa [#allocation3], 0
    %15 = vsyncpa [#allocation6], 0
    %16 = vsyncpa [#allocation9], 0
    %17 = vsyncpa [#allocation4], 0
    // Predicated region
    $region2: #{tpu_custom_call.1} parent=1 // pred_check
      _
    $region3: #{tpu_custom_call.1} parent=1 // pred_check_branch
      %19 = sbr.rel (0) target = $region5
    $region4: #{tpu_custom_call.1} parent=1 // pred_region
      %s21 = ssub.s32 128, 128
      %22 = vsyncadd [#allocation3], %s21
      %s24 = sshll.u32 [#allocation2], 4
      %s25 = int_to_ptr.vmem [resolvable:$true] %s24
      %27 = dma.hbm_to_vmem [thread:$0]  %s0, 128, %s25, [#allocation3]
    $region5: #{tpu_custom_call.1} parent=1 // pred_fallthru
      _
    // Predicated region
    $region6: #{tpu_custom_call.1} parent=1 // pred_check
      _
    $region7: #{tpu_custom_call.1} parent=1 // pred_check_branch
      %29 = sbr.rel (0) target = $region9
    $region8: #{tpu_custom_call.1} parent=1 // pred_region
      %s31 = ssub.s32 128, 128
      %32 = vsyncadd [#allocation6], %s31
      %s33 = sshll.u32 [#allocation5], 4
      %s34 = int_to_ptr.vmem [resolvable:$true] %s33
      %39 = dma.hbm_to_vmem [thread:$0]  %s1, 128, %s34, [#allocation6], 64, 64, 4
    $region9: #{tpu_custom_call.1} parent=1 // pred_fallthru
      _
    // Predicated region
    $region10: #{tpu_custom_call.1} parent=1 // pred_check
      _
    $region11: #{tpu_custom_call.1} parent=1 // pred_check_branch
      %41 = sbr.rel (0) target = $region13
    $region12: #{tpu_custom_call.1} parent=1 // pred_region
      _
    $region13: #{tpu_custom_call.1} parent=1 // pred_fallthru
      _
    // Predicated region
    $region14: #{tpu_custom_call.1} parent=1 // pred_check
      _
    $region15: #{tpu_custom_call.1} parent=1 // pred_check_branch
      %43 = sbr.rel (0) target = $region17
    $region16: #{tpu_custom_call.1} parent=1 // pred_region
      %s45 = ssub.s32 1024, 1024
      %46 = vsyncadd [#allocation6], %s45
      %s47 = sshll.u32 [#allocation7], 4
      %s48 = int_to_ptr.vmem [resolvable:$true] %s47
      %53 = dma.hbm_to_vmem [thread:$0]  %s3, 1024, %s48, [#allocation6], 64, 64, 4
    $region17: #{tpu_custom_call.1} parent=1 // pred_fallthru
      _
    // Predicated region
    $region18: #{tpu_custom_call.1} parent=1 // pred_check
      _
    $region19: #{tpu_custom_call.1} parent=1 // pred_check_branch
      %55 = sbr.rel (0) target = $region21
    $region20: #{tpu_custom_call.1} parent=1 // pred_region
      _
    $region21: #{tpu_custom_call.1} parent=1 // pred_fallthru
      _
    // Predicated region
    $region22: #{tpu_custom_call.1} parent=1 // pred_check
      _
    $region23: #{tpu_custom_call.1} parent=1 // pred_check_branch
      %57 = sbr.rel (0) target = $region25
    $region24: #{tpu_custom_call.1} parent=1 // pred_region
      %s59 = ssub.s32 1024, 1024
      %60 = vsyncadd [#allocation9], %s59
      %s61 = sshll.u32 [#allocation8], 4
      %s62 = int_to_ptr.vmem [resolvable:$true] %s61
      %67 = dma.hbm_to_vmem [thread:$0]  %s5, 1024, %s62, [#allocation9], 64, 64, 4
    $region25: #{tpu_custom_call.1} parent=1 // pred_fallthru
      _
    // Predicated region
    $region26: #{tpu_custom_call.1} parent=1 // pred_check
      _
    $region27: #{tpu_custom_call.1} parent=1 // pred_check_branch
      %69 = sbr.rel (0) target = $region29
    $region28: #{tpu_custom_call.1} parent=1 // pred_region
      _
    $region29: #{tpu_custom_call.1} parent=1 // pred_fallthru
      _
    // Predicated region
    $region30: #{tpu_custom_call.1} parent=1 // pred_check
      _
    $region31: #{tpu_custom_call.1} parent=1 // pred_check_branch
      %71 = sbr.rel (0) target = $region33
    $region32: #{tpu_custom_call.1} parent=1 // pred_region
      %s73 = ssub.s32 1024, 1024
      %74 = vsyncadd [#allocation9], %s73
      %s75 = sshll.u32 [#allocation10], 4
      %s76 = int_to_ptr.vmem [resolvable:$true] %s75
      %81 = dma.hbm_to_vmem [thread:$0]  %s7, 1024, %s76, [#allocation9], 64, 64, 4
    $region33: #{tpu_custom_call.1} parent=1 // pred_fallthru
      _
    // Predicated region
    $region34: #{tpu_custom_call.1} parent=1 // pred_check
      _
    $region35: #{tpu_custom_call.1} parent=1 // pred_check_branch
      %83 = sbr.rel (0) target = $region37
    $region36: #{tpu_custom_call.1} parent=1 // pred_region
      _
    $region37: #{tpu_custom_call.1} parent=1 // pred_fallthru
      _
    // Predicated region
    $region38: #{tpu_custom_call.1} parent=1 // pred_check
      _
    $region39: #{tpu_custom_call.1} parent=1 // pred_check_branch
      %85 = sbr.rel (0) target = $region41
    $region40: #{tpu_custom_call.1} parent=1 // pred_region
      %86 = dma.done [#allocation3], 128
    $region41: #{tpu_custom_call.1} parent=1 // pred_fallthru
      _
    // Predicated region
    $region42: #{tpu_custom_call.1} parent=1 // pred_check
      _
    $region43: #{tpu_custom_call.1} parent=1 // pred_check_branch
      %88 = sbr.rel (0) target = $region45
    $region44: #{tpu_custom_call.1} parent=1 // pred_region
      %89 = dma.done [#allocation6], 128
    $region45: #{tpu_custom_call.1} parent=1 // pred_fallthru
      _
    // Predicated region
    $region46: #{tpu_custom_call.1} parent=1 // pred_check
      _
    $region47: #{tpu_custom_call.1} parent=1 // pred_check_branch
      %91 = sbr.rel (0) target = $region49
    $region48: #{tpu_custom_call.1} parent=1 // pred_region
      %92 = dma.done [#allocation6], 1024
    $region49: #{tpu_custom_call.1} parent=1 // pred_fallthru
      _
    // Predicated region
    $region50: #{tpu_custom_call.1} parent=1 // pred_check
      _
    $region51: #{tpu_custom_call.1} parent=1 // pred_check_branch
      %94 = sbr.rel (0) target = $region53
    $region52: #{tpu_custom_call.1} parent=1 // pred_region
      %95 = dma.done [#allocation9], 1024
    $region53: #{tpu_custom_call.1} parent=1 // pred_fallthru
      _
    // Predicated region
    $region54: #{tpu_custom_call.1} parent=1 // pred_check
      _
    $region55: #{tpu_custom_call.1} parent=1 // pred_check_branch
      %97 = sbr.rel (0) target = $region57
    $region56: #{tpu_custom_call.1} parent=1 // pred_region
      %98 = dma.done [#allocation9], 1024
    $region57: #{tpu_custom_call.1} parent=1 // pred_fallthru
      _
    %v100 = vld [vmem:[#allocation2] sm:$0xff]
    %v101 = vpack.c.bf16 %v100, %v100
    %v102 = vld [vmem:[#allocation5] sm:$0xf]
    %v103 = vld [vmem:[#allocation5 + $0x4] sm:$0xf]
    %v104 = vld [vmem:[%s2] sm:$0x1]
    %v106 = vlaneseq
    %v107 = vshrl.u32 %v106, 7
    %v108 = vsub.s32 0, %v107
    %v109 = vrot.slane %v104, %v108
    %v113 = vunpack.c.l.b16 %v102
    %v114 = vunpack.c.l.b16 %v103
    %v115 = vpack.c.b16 %v114, %v113
    %vm117 = vcmask 130048
    %v119 = vsel %vm117, %v101, 0
    %121 = vmatprep.subr.bf16.mxu0 0
    %122 = vmatpush1.bf16.msra.mxu0 %v115
    %123 = vmatprep.subr.bf16.mxu0 0
    %124 = vmatpush1.bf16.msra.mxu0 0
    %125 = vmatprep.subr.bf16.mxu0 0
    %126 = vmatpush1.bf16.msra.mxu0 0
    %127 = vmatprep.subr.bf16.mxu0 0
    %128 = vmatpush1.bf16.msra.mxu0 0
    %129 = vmatprep.subr.bf16.mxu0 0
    %130 = vmatpush1.bf16.msra.mxu0 0
    %131 = vmatprep.subr.bf16.mxu0 0
    %132 = vmatpush1.bf16.msra.mxu0 0
    %133 = vmatprep.subr.bf16.mxu0 0
    %134 = vmatpush1.bf16.msra.mxu0 0
    %135 = vmatprep.subr.bf16.mxu0 0
    %136 = vmatpush1.bf16.msra.mxu0 0
    %137 = vmatprep.subr.bf16.mxu0 0
    %138 = vmatpush1.bf16.msra.mxu0 0
    %139 = vmatprep.subr.bf16.mxu0 0
    %140 = vmatpush1.bf16.msra.mxu0 0
    %141 = vmatprep.subr.bf16.mxu0 0
    %142 = vmatpush1.bf16.msra.mxu0 0
    %143 = vmatprep.subr.bf16.mxu0 0
    %144 = vmatpush1.bf16.msra.mxu0 0
    %145 = vmatprep.subr.bf16.mxu0 0
    %146 = vmatpush1.bf16.msra.mxu0 0
    %147 = vmatprep.subr.bf16.mxu0 0
    %148 = vmatpush1.bf16.msra.mxu0 0
    %149 = vmatprep.subr.bf16.mxu0 0
    %150 = vmatpush1.bf16.msra.mxu0 0
    %151 = vmatprep.subr.bf16.mxu0 0
    %152 = vmatpush1.bf16.msra.mxu0 0
    %153 = vmatprep.mubr.bf16.mxu0 0
    %154 = vmatmul.mubr.bf16.gmra.mrb[0].mxu0 %v119
    %v155 = vpop.f32.mrb[0].mxu0
    %v156 = vadd.f32 %v109, %v155
    %v157 = vpop.f32.mrb[0].mxu0
    %v158 = vpop.f32.mrb[0].mxu0
    %v159 = vpop.f32.mrb[0].mxu0
    %160 = vdwg.mxu0
    %v161 = vxor.u32 %v156, 2147483648
    %v162 = vmul.f32 %v161, 1.442695
    %v163 = vpow.pop %v162
    %v164 = vadd.f32 %v163, 1.0
    %v165 = vrcp.pop %v164
    %v166 = vmul.f32 1.0, %v165
    %v167 = vtanh.pop %v156
    %168 = vrot.lane.b32.xlu0 %v167, 96
    %v169 = vpop.permute.xlu0 %168
    %170 = vrot.lane.b32.xlu0 %v166, 64
    %v171 = vpop.permute.xlu0 %170
    %v172 = vmul.f32 %v166, %v169
    %v173 = vtanh.pop %v172
    %v174 = vmul.f32 %v171, %v173
    %v175 = vpack.c.bf16 %v174, %v174
    %v176 = vld [vmem:[#allocation7] sm:$0xf]
    %v177 = vld [vmem:[#allocation7 + $0x4] sm:$0xf]
    %v178 = vld [vmem:[#allocation7 + $0x8] sm:$0xf]
    %v179 = vld [vmem:[#allocation7 + $0xc] sm:$0xf]
    %v180 = vld [vmem:[#allocation7 + $0x10] sm:$0xf]
    %v181 = vld [vmem:[#allocation7 + $0x14] sm:$0xf]
    %v182 = vld [vmem:[#allocation7 + $0x18] sm:$0xf]
    %v183 = vld [vmem:[#allocation7 + $0x1c] sm:$0xf]
    %v184 = vld [vmem:[#allocation7 + $0x20] sm:$0xf]
    %v185 = vld [vmem:[#allocation7 + $0x24] sm:$0xf]
    %v186 = vld [vmem:[#allocation7 + $0x28] sm:$0xf]
    %v187 = vld [vmem:[#allocation7 + $0x2c] sm:$0xf]
    %v188 = vld [vmem:[#allocation7 + $0x30] sm:$0xf]
    %v189 = vld [vmem:[#allocation7 + $0x34] sm:$0xf]
    %v190 = vld [vmem:[#allocation7 + $0x38] sm:$0xf]
    %v191 = vld [vmem:[#allocation7 + $0x3c] sm:$0xf]
    %v192 = vld [vmem:[%s4] sm:$0x1]
    %v194 = vlaneseq
    %v195 = vshrl.u32 %v194, 7
    %v196 = vsub.s32 0, %v195
    %v197 = vrot.slane %v192, %v196
    %v215 = vunpack.c.l.b16 %v176
    %v216 = vunpack.c.l.b16 %v177
    %v217 = vunpack.c.l.b16 %v178
    %v218 = vunpack.c.l.b16 %v179
    %v219 = vunpack.c.l.b16 %v180
    %v220 = vunpack.c.l.b16 %v181
    %v221 = vunpack.c.l.b16 %v182
    %v222 = vunpack.c.l.b16 %v183
    %v223 = vunpack.c.l.b16 %v184
    %v224 = vunpack.c.l.b16 %v185
    %v225 = vunpack.c.l.b16 %v186
    %v226 = vunpack.c.l.b16 %v187
    %v227 = vunpack.c.l.b16 %v188
    %v228 = vunpack.c.l.b16 %v189
    %v229 = vunpack.c.l.b16 %v190
    %v230 = vunpack.c.l.b16 %v191
    %v231 = vpack.c.b16 %v216, %v215
    %v232 = vpack.c.b16 %v218, %v217
    %v233 = vpack.c.b16 %v220, %v219
    %v234 = vpack.c.b16 %v222, %v221
    %v235 = vpack.c.b16 %v224, %v223
    %v236 = vpack.c.b16 %v226, %v225
    %v237 = vpack.c.b16 %v228, %v227
    %v238 = vpack.c.b16 %v230, %v229
    %247 = vmatprep.subr.bf16.mxu0 0
    %248 = vmatpush1.bf16.msra.mxu0 %v231
    %249 = vmatprep.subr.bf16.mxu0 0
    %250 = vmatpush1.bf16.msra.mxu0 %v232
    %251 = vmatprep.subr.bf16.mxu0 0
    %252 = vmatpush1.bf16.msra.mxu0 %v233
    %253 = vmatprep.subr.bf16.mxu0 0
    %254 = vmatpush1.bf16.msra.mxu0 %v234
    %255 = vmatprep.subr.bf16.mxu0 0
    %256 = vmatpush1.bf16.msra.mxu0 %v235
    %257 = vmatprep.subr.bf16.mxu0 0
    %258 = vmatpush1.bf16.msra.mxu0 %v236
    %259 = vmatprep.subr.bf16.mxu0 0
    %260 = vmatpush1.bf16.msra.mxu0 %v237
    %261 = vmatprep.subr.bf16.mxu0 0
    %262 = vmatpush1.bf16.msra.mxu0 %v238
    %263 = vmatprep.subr.bf16.mxu0 0
    %264 = vmatpush1.bf16.msra.mxu0 0
    %265 = vmatprep.subr.bf16.mxu0 0
    %266 = vmatpush1.bf16.msra.mxu0 0
    %267 = vmatprep.subr.bf16.mxu0 0
    %268 = vmatpush1.bf16.msra.mxu0 0
    %269 = vmatprep.subr.bf16.mxu0 0
    %270 = vmatpush1.bf16.msra.mxu0 0
    %271 = vmatprep.subr.bf16.mxu0 0
    %272 = vmatpush1.bf16.msra.mxu0 0
    %273 = vmatprep.subr.bf16.mxu0 0
    %274 = vmatpush1.bf16.msra.mxu0 0
    %275 = vmatprep.subr.bf16.mxu0 0
    %276 = vmatpush1.bf16.msra.mxu0 0
    %277 = vmatprep.subr.bf16.mxu0 0
    %278 = vmatpush1.bf16.msra.mxu0 0
    %279 = vmatprep.mubr.bf16.mxu0 0
    %280 = vmatmul.mubr.bf16.gmra.mrb[0].mxu0 %v175
    %v281 = vpop.f32.mrb[0].mxu0
    %v282 = vadd.f32 %v197, %v281
    %v283 = vpop.f32.mrb[0].mxu0
    %v284 = vpop.f32.mrb[0].mxu0
    %v285 = vpop.f32.mrb[0].mxu0
    %286 = vdwg.mxu0
    %v287 = vmax.f32 %v282, 0.0
    %v288 = vpack.c.bf16 %v287, %v287
    %v289 = vld [vmem:[#allocation8] sm:$0xf]
    %v290 = vld [vmem:[#allocation8 + $0x4] sm:$0xf]
    %v291 = vld [vmem:[#allocation8 + $0x8] sm:$0xf]
    %v292 = vld [vmem:[#allocation8 + $0xc] sm:$0xf]
    %v293 = vld [vmem:[#allocation8 + $0x10] sm:$0xf]
    %v294 = vld [vmem:[#allocation8 + $0x14] sm:$0xf]
    %v295 = vld [vmem:[#allocation8 + $0x18] sm:$0xf]
    %v296 = vld [vmem:[#allocation8 + $0x1c] sm:$0xf]
    %v297 = vld [vmem:[#allocation8 + $0x20] sm:$0xf]
    %v298 = vld [vmem:[#allocation8 + $0x24] sm:$0xf]
    %v299 = vld [vmem:[#allocation8 + $0x28] sm:$0xf]
    %v300 = vld [vmem:[#allocation8 + $0x2c] sm:$0xf]
    %v301 = vld [vmem:[#allocation8 + $0x30] sm:$0xf]
    %v302 = vld [vmem:[#allocation8 + $0x34] sm:$0xf]
    %v303 = vld [vmem:[#allocation8 + $0x38] sm:$0xf]
    %v304 = vld [vmem:[#allocation8 + $0x3c] sm:$0xf]
    %v305 = vld [vmem:[%s6] sm:$0x1]
    %v307 = vlaneseq
    %v308 = vshrl.u32 %v307, 7
    %v309 = vsub.s32 0, %v308
    %v310 = vrot.slane %v305, %v309
    %v328 = vunpack.c.l.b16 %v289
    %v329 = vunpack.c.l.b16 %v290
    %v330 = vunpack.c.l.b16 %v291
    %v331 = vunpack.c.l.b16 %v292
    %v332 = vunpack.c.l.b16 %v293
    %v333 = vunpack.c.l.b16 %v294
    %v334 = vunpack.c.l.b16 %v295
    %v335 = vunpack.c.l.b16 %v296
    %v336 = vunpack.c.l.b16 %v297
    %v337 = vunpack.c.l.b16 %v298
    %v338 = vunpack.c.l.b16 %v299
    %v339 = vunpack.c.l.b16 %v300
    %v340 = vunpack.c.l.b16 %v301
    %v341 = vunpack.c.l.b16 %v302
    %v342 = vunpack.c.l.b16 %v303
    %v343 = vunpack.c.l.b16 %v304
    %v344 = vpack.c.b16 %v329, %v328
    %v345 = vpack.c.b16 %v331, %v330
    %v346 = vpack.c.b16 %v333, %v332
    %v347 = vpack.c.b16 %v335, %v334
    %v348 = vpack.c.b16 %v337, %v336
    %v349 = vpack.c.b16 %v339, %v338
    %v350 = vpack.c.b16 %v341, %v340
    %v351 = vpack.c.b16 %v343, %v342
    %360 = vmatprep.subr.bf16.mxu0 0
    %361 = vmatpush1.bf16.msra.mxu0 %v344
    %362 = vmatprep.subr.bf16.mxu0 0
    %363 = vmatpush1.bf16.msra.mxu0 %v345
    %364 = vmatprep.subr.bf16.mxu0 0
    %365 = vmatpush1.bf16.msra.mxu0 %v346
    %366 = vmatprep.subr.bf16.mxu0 0
    %367 = vmatpush1.bf16.msra.mxu0 %v347
    %368 = vmatprep.subr.bf16.mxu0 0
    %369 = vmatpush1.bf16.msra.mxu0 %v348
    %370 = vmatprep.subr.bf16.mxu0 0
    %371 = vmatpush1.bf16.msra.mxu0 %v349
    %372 = vmatprep.subr.bf16.mxu0 0
    %373 = vmatpush1.bf16.msra.mxu0 %v350
    %374 = vmatprep.subr.bf16.mxu0 0
    %375 = vmatpush1.bf16.msra.mxu0 %v351
    %376 = vmatprep.subr.bf16.mxu0 0
    %377 = vmatpush1.bf16.msra.mxu0 0
    %378 = vmatprep.subr.bf16.mxu0 0
    %379 = vmatpush1.bf16.msra.mxu0 0
    %380 = vmatprep.subr.bf16.mxu0 0
    %381 = vmatpush1.bf16.msra.mxu0 0
    %382 = vmatprep.subr.bf16.mxu0 0
    %383 = vmatpush1.bf16.msra.mxu0 0
    %384 = vmatprep.subr.bf16.mxu0 0
    %385 = vmatpush1.bf16.msra.mxu0 0
    %386 = vmatprep.subr.bf16.mxu0 0
    %387 = vmatpush1.bf16.msra.mxu0 0
    %388 = vmatprep.subr.bf16.mxu0 0
    %389 = vmatpush1.bf16.msra.mxu0 0
    %390 = vmatprep.subr.bf16.mxu0 0
    %391 = vmatpush1.bf16.msra.mxu0 0
    %392 = vmatprep.mubr.bf16.mxu0 0
    %393 = vmatmul.mubr.bf16.gmra.mrb[0].mxu0 %v288
    %v394 = vpop.f32.mrb[0].mxu0
    %v395 = vadd.f32 %v310, %v394
    %v396 = vpop.f32.mrb[0].mxu0
    %v397 = vpop.f32.mrb[0].mxu0
    %v398 = vpop.f32.mrb[0].mxu0
    %399 = vdwg.mxu0
    %v400 = vmax.f32 %v395, 0.0
    %v401 = vpack.c.bf16 %v400, %v400
    %v402 = vld [vmem:[#allocation10] sm:$0xf]
    %v403 = vld [vmem:[#allocation10 + $0x4] sm:$0xf]
    %v404 = vld [vmem:[#allocation10 + $0x8] sm:$0xf]
    %v405 = vld [vmem:[#allocation10 + $0xc] sm:$0xf]
    %v406 = vld [vmem:[#allocation10 + $0x10] sm:$0xf]
    %v407 = vld [vmem:[#allocation10 + $0x14] sm:$0xf]
    %v408 = vld [vmem:[#allocation10 + $0x18] sm:$0xf]
    %v409 = vld [vmem:[#allocation10 + $0x1c] sm:$0xf]
    %v410 = vld [vmem:[#allocation10 + $0x20] sm:$0xf]
    %v411 = vld [vmem:[#allocation10 + $0x24] sm:$0xf]
    %v412 = vld [vmem:[#allocation10 + $0x28] sm:$0xf]
    %v413 = vld [vmem:[#allocation10 + $0x2c] sm:$0xf]
    %v414 = vld [vmem:[#allocation10 + $0x30] sm:$0xf]
    %v415 = vld [vmem:[#allocation10 + $0x34] sm:$0xf]
    %v416 = vld [vmem:[#allocation10 + $0x38] sm:$0xf]
    %v417 = vld [vmem:[#allocation10 + $0x3c] sm:$0xf]
    %v418 = vld [vmem:[%s8] sm:$0x1]
    %v420 = vlaneseq
    %v421 = vshrl.u32 %v420, 7
    %v422 = vsub.s32 0, %v421
    %v423 = vrot.slane %v418, %v422
    %v441 = vunpack.c.l.b16 %v402
    %v442 = vunpack.c.l.b16 %v403
    %v443 = vunpack.c.l.b16 %v404
    %v444 = vunpack.c.l.b16 %v405
    %v445 = vunpack.c.l.b16 %v406
    %v446 = vunpack.c.l.b16 %v407
    %v447 = vunpack.c.l.b16 %v408
    %v448 = vunpack.c.l.b16 %v409
    %v449 = vunpack.c.l.b16 %v410
    %v450 = vunpack.c.l.b16 %v411
    %v451 = vunpack.c.l.b16 %v412
    %v452 = vunpack.c.l.b16 %v413
    %v453 = vunpack.c.l.b16 %v414
    %v454 = vunpack.c.l.b16 %v415
    %v455 = vunpack.c.l.b16 %v416
    %v456 = vunpack.c.l.b16 %v417
    %v457 = vpack.c.b16 %v442, %v441
    %v458 = vpack.c.b16 %v444, %v443
    %v459 = vpack.c.b16 %v446, %v445
    %v460 = vpack.c.b16 %v448, %v447
    %v461 = vpack.c.b16 %v450, %v449
    %v462 = vpack.c.b16 %v452, %v451
    %v463 = vpack.c.b16 %v454, %v453
    %v464 = vpack.c.b16 %v456, %v455
    %473 = vmatprep.subr.bf16.mxu0 0
    %474 = vmatpush1.bf16.msra.mxu0 %v457
    %475 = vmatprep.subr.bf16.mxu0 0
    %476 = vmatpush1.bf16.msra.mxu0 %v458
    %477 = vmatprep.subr.bf16.mxu0 0
    %478 = vmatpush1.bf16.msra.mxu0 %v459
    %479 = vmatprep.subr.bf16.mxu0 0
    %480 = vmatpush1.bf16.msra.mxu0 %v460
    %481 = vmatprep.subr.bf16.mxu0 0
    %482 = vmatpush1.bf16.msra.mxu0 %v461
    %483 = vmatprep.subr.bf16.mxu0 0
    %484 = vmatpush1.bf16.msra.mxu0 %v462
    %485 = vmatprep.subr.bf16.mxu0 0
    %486 = vmatpush1.bf16.msra.mxu0 %v463
    %487 = vmatprep.subr.bf16.mxu0 0
    %488 = vmatpush1.bf16.msra.mxu0 %v464
    %489 = vmatprep.subr.bf16.mxu0 0
    %490 = vmatpush1.bf16.msra.mxu0 0
    %491 = vmatprep.subr.bf16.mxu0 0
    %492 = vmatpush1.bf16.msra.mxu0 0
    %493 = vmatprep.subr.bf16.mxu0 0
    %494 = vmatpush1.bf16.msra.mxu0 0
    %495 = vmatprep.subr.bf16.mxu0 0
    %496 = vmatpush1.bf16.msra.mxu0 0
    %497 = vmatprep.subr.bf16.mxu0 0
    %498 = vmatpush1.bf16.msra.mxu0 0
    %499 = vmatprep.subr.bf16.mxu0 0
    %500 = vmatpush1.bf16.msra.mxu0 0
    %501 = vmatprep.subr.bf16.mxu0 0
    %502 = vmatpush1.bf16.msra.mxu0 0
    %503 = vmatprep.subr.bf16.mxu0 0
    %504 = vmatpush1.bf16.msra.mxu0 0
    %505 = vmatprep.mubr.bf16.mxu0 0
    %506 = vmatmul.mubr.bf16.gmra.mrb[0].mxu0 %v401
    %v507 = vpop.f32.mrb[0].mxu0
    %v508 = vadd.f32 %v423, %v507
    %v509 = vpop.f32.mrb[0].mxu0
    %v510 = vpop.f32.mrb[0].mxu0
    %v511 = vpop.f32.mrb[0].mxu0
    %512 = vdwg.mxu0
    %v513 = vmax.f32 %v508, 0.0
    %vm514 = vcmp.ne.f32.partialorder %v508, %v508
    %v515 = vadd.f32 %v508, 0.0
    %v516 = vand.u32 2147483647, %v508
    %v517 = vsub.f32 0.0, %v516
    %v518 = vmul.f32 %v517, 1.442695
    %v519 = vpow.pop %v518
    %v520 = vadd.f32 %v519, 1.0
    %v521 = vlog2.pop %v520
    %v522 = vmul.f32 %v521, 0.6931472
    %v523 = vmul.f32 -0.5, %v519
    %v524 = vadd.f32 %v523, 1.0
    %v525 = vmul.f32 %v524, %v519
    %v526 = vand.u32 2147483647, %v519
    %vm527 = vcmp.lt.f32.partialorder %v526, 0.0004427343
    %v528 = vsel %vm527, %v525, %v522
    %v529 = vadd.f32 %v513, %v528
    %v530 = vsel %vm514, %v515, %v529
    %v531 = vadd.f32 %v530, 0.001
    %vm532 = vcmask 64512
    %533 = vst.msk [vmem:[#allocation11] sm:$0xff] %vm532, %v531
    // Predicated region
    $region58: #{tpu_custom_call.1} parent=1 // pred_check
      _
    $region59: #{tpu_custom_call.1} parent=1 // pred_check_branch
      %535 = sbr.rel (0) target = $region61
    $region60: #{tpu_custom_call.1} parent=1 // pred_region
      %s537 = ssub.s32 128, 128
      %538 = vsyncadd [#allocation4], %s537
      %s540 = sshll.u32 [#allocation11], 4
      %s541 = int_to_ptr.vmem [resolvable:$true] %s540
      %543 = dma.vmem_to_hbm [thread:$0]  %s541, 128, %s9, [#allocation4]
    $region61: #{tpu_custom_call.1} parent=1 // pred_fallthru
      _
    // Predicated region
    $region62: #{tpu_custom_call.1} parent=1 // pred_check
      _
    $region63: #{tpu_custom_call.1} parent=1 // pred_check_branch
      %545 = sbr.rel (0) target = $region65
    $region64: #{tpu_custom_call.1} parent=1 // pred_region
      %546 = dma.done [#allocation4], 128
    $region65: #{tpu_custom_call.1} parent=1 // pred_fallthru
      _
    %547 = vsyncpa [#allocation3], 1
    %548 = vsyncpa [#allocation6], 1
    %549 = vsyncpa [#allocation9], 1
    %550 = vsyncpa [#allocation4], 1

</llo_original>
